<compile_context>
chip_gen: v7x
topology: tpu7x:2x2x1
jax: 0.10.0
libtpu: 0.0.40
codegen_flags: <defaults>
</compile_context>

<pallas_src>
import functools

import jax
import jax.numpy as jnp
from jax.experimental import pallas as pl
from jax.experimental.pallas import tpu as pltpu


def _round_up(a, m):
    return (a + m - 1) // m * m


def _conv_bn_relu_kernel(x_ref, w_ref, shift_ref, o_ref, *, compute_dtype):
    # x_ref:     (C_in, TN)     spatial tile of one batch element (B squeezed)
    # w_ref:     (C_out, C_in)  BN-scale-folded conv weight (grid-invariant)
    # shift_ref: (C_out, 1)     folded BN shift (includes conv bias)
    # o_ref:     (C_out, TN)
    x = x_ref[...]
    if compute_dtype is not None and x.dtype != compute_dtype:
        x = x.astype(compute_dtype)          # in-kernel cast: hidden under the DMA
    y = jnp.dot(w_ref[...], x, preferred_element_type=jnp.float32)  # MXU
    y = y + shift_ref[...]                                          # per-channel shift
    o_ref[...] = jnp.maximum(y, 0.0).astype(o_ref.dtype)            # ReLU


def conv_bn_relu_1d(
    x,
    weight,
    bias,
    gamma,
    beta,
    running_mean,
    running_var,
    eps=1e-5,
    tile_n=1024,
    compute_dtype=None,
    vmem_budget_bytes=36 * 1024 * 1024,
):
    """x: (B, C_in, N) -> (B, C_out, N).  Conv1d(k=1) + eval-mode BN + ReLU."""
    B, C_in, N = x.shape
    if weight.ndim == 3:                      # PyTorch Conv1d weight (C_out, C_in, 1)
        weight = weight[..., 0]
    C_out = weight.shape[0]
    out_dtype = x.dtype

    # ---- fold eval-mode BN + conv bias (tiny plain-JAX glue, fuses into one op) ----
    inv_std = jax.lax.rsqrt(running_var.astype(jnp.float32) + eps)            # (C_out,)
    scale = gamma.astype(jnp.float32) * inv_std                               # (C_out,)
    shift = beta.astype(jnp.float32) + (
        bias.astype(jnp.float32) - running_mean.astype(jnp.float32)) * scale
    w_folded = weight.astype(jnp.float32) * scale[:, None]                    # (C_out, C_in)
    if compute_dtype is not None:
        w_folded = w_folded.astype(compute_dtype)   # fuses with the fold (no extra pass)
    shift = shift.reshape(C_out, 1)

    # ---- spatial tiling: full N if small, else a 128-multiple tile under VMEM budget ----
    if N <= tile_n:
        TN = N                                       # full-dim block (always legal)
    else:
        TN = _round_up(min(tile_n, N), 128)

        def _footprint(tn):                          # double-buffered working set
            return (2 * C_in * tn * x.dtype.itemsize
                    + 2 * C_out * tn * jnp.dtype(out_dtype).itemsize
                    + 2 * w_folded.size * w_folded.dtype.itemsize
                    + 2 * shift.size * shift.dtype.itemsize)

        while TN > 128 and _footprint(TN) > vmem_budget_bytes:
            TN -= 128

    grid = (B, pl.cdiv(N, TN))

    flops = 2 * C_out * C_in * B * N
    bytes_accessed = (
        x.size * x.dtype.itemsize
        + w_folded.size * w_folded.dtype.itemsize
        + shift.size * shift.dtype.itemsize
        + B * C_out * N * jnp.dtype(out_dtype).itemsize
    )

    kernel = functools.partial(_conv_bn_relu_kernel, compute_dtype=compute_dtype)

    out = pl.pallas_call(
        kernel,
        out_shape=jax.ShapeDtypeStruct((B, C_out, N), out_dtype),
        grid_spec=pltpu.PrefetchScalarGridSpec(
            num_scalar_prefetch=0,
            grid=grid,
            in_specs=[
                pl.BlockSpec((None, C_in, TN), lambda b, n: (b, 0, n)),   # X tile (B squeezed)
                pl.BlockSpec((C_out, C_in), lambda b, n: (0, 0)),         # W resident
                pl.BlockSpec((C_out, 1), lambda b, n: (0, 0)),            # shift resident
            ],
            out_specs=pl.BlockSpec((None, C_out, TN), lambda b, n: (b, 0, n)),
        ),
        compiler_params=pltpu.CompilerParams(
            dimension_semantics=("parallel", "parallel"),
            vmem_limit_bytes=48 * 1024 * 1024,
        ),
        cost_estimate=pl.CostEstimate(
            flops=flops, transcendentals=0, bytes_accessed=bytes_accessed
        ),
    )(x, w_folded, shift)

    return out


def _reference(x, weight, bias, gamma, beta, running_mean, running_var, eps=1e-5):
    # Pure-JAX reference: conv1d(k=1) + eval-mode BN + ReLU.
    y = jnp.einsum("oc,bcn->bon", weight, x) + bias[None, :, None]
    y = (y - running_mean[None, :, None]) / jnp.sqrt(running_var[None, :, None] + eps)
    y = y * gamma[None, :, None] + beta[None, :, None]
    return jnp.maximum(y, 0.0)


if __name__ == "__main__":
    # Small shapes consistent with the module: batch=2, in_channels=4, out_channels=32, points=16.
    B, C_in, C_out, N = 2, 4, 32, 16

    key = jax.random.PRNGKey(0)
    kx, kw, kb, kg, kbeta, km, kv = jax.random.split(key, 7)

    x = jax.random.normal(kx, (B, C_in, N), dtype=jnp.float32)
    weight = jax.random.normal(kw, (C_out, C_in), dtype=jnp.float32) * 0.1   # Conv1d weight (k=1)
    bias = jax.random.normal(kb, (C_out,), dtype=jnp.float32) * 0.1          # Conv1d bias
    gamma = 1.0 + 0.1 * jax.random.normal(kg, (C_out,), dtype=jnp.float32)   # BN weight
    beta = 0.1 * jax.random.normal(kbeta, (C_out,), dtype=jnp.float32)       # BN bias
    running_mean = 0.1 * jax.random.normal(km, (C_out,), dtype=jnp.float32)  # BN running mean
    running_var = jnp.abs(1.0 + 0.1 * jax.random.normal(kv, (C_out,), dtype=jnp.float32))  # BN running var

    fn = jax.jit(functools.partial(conv_bn_relu_1d, eps=1e-5))
    out = fn(x, weight, bias, gamma, beta, running_mean, running_var)
    out = jax.block_until_ready(out)

    ref = _reference(x, weight, bias, gamma, beta, running_mean, running_var)
    assert out.shape == (B, C_out, N)
    assert jnp.allclose(out, ref, atol=1e-4, rtol=1e-4)

    print("KERNEL_OK")
</pallas_src>

<mosaic_0001>
module attributes {stable_mosaic.version = 11 : i64} {
  func.func @_conv_bn_relu_kernel(%arg0: i32, %arg1: i32, %arg2: memref<1x4x16xf32, #tpu.memory_space<vmem>>, %arg3: memref<32x4xf32, #tpu.memory_space<vmem>>, %arg4: memref<32x1xf32, #tpu.memory_space<vmem>>, %arg5: memref<1x32x16xf32, #tpu.memory_space<vmem>>) attributes {dimension_semantics = [#tpu.dimension_semantics<parallel>, #tpu.dimension_semantics<parallel>], iteration_bounds = array<i64: 2, 1>, scalar_prefetch = 0 : i64, scratch_operands = 0 : i64, tpu.core_type = #tpu.core_type<tc>, window_params = [{transform_indices = @transform_0, window_bounds = array<i64: 1, 4, 16>}, {pipeline_mode = #tpu.pipeline_mode<synchronous>, transform_indices = @transform_1, window_bounds = array<i64: 32, 4>}, {pipeline_mode = #tpu.pipeline_mode<synchronous>, transform_indices = @transform_2, window_bounds = array<i64: 32, 1>}, {transform_indices = @transform_3, window_bounds = array<i64: 1, 32, 16>}]} {
    %c0 = arith.constant 0 : index
    %c0_0 = arith.constant 0 : index
    %c0_1 = arith.constant 0 : index
    %0 = vector.load %arg2[%c0, %c0_0, %c0_1] : memref<1x4x16xf32, #tpu.memory_space<vmem>>, vector<1x4x16xf32>
    %1 = vector.shape_cast %0 : vector<1x4x16xf32> to vector<4x16xf32>
    %c0_2 = arith.constant 0 : index
    %c0_3 = arith.constant 0 : index
    %2 = vector.load %arg3[%c0_2, %c0_3] : memref<32x4xf32, #tpu.memory_space<vmem>>, vector<32x4xf32>
    %cst = arith.constant dense<0.000000e+00> : vector<32x16xf32>
    %3 = tpu.matmul %2, %1, %cst {dimension_numbers = #tpu.dot_dimension_numbers<[1], [0], [0], [1], [0, 0, 1, 1], [], []>} : vector<32x4xf32>, vector<4x16xf32>, vector<32x16xf32> -> vector<32x16xf32>
    %c0_4 = arith.constant 0 : index
    %c0_5 = arith.constant 0 : index
    %4 = vector.load %arg4[%c0_4, %c0_5] : memref<32x1xf32, #tpu.memory_space<vmem>>, vector<32x1xf32>
    %5 = vector.broadcast %4 : vector<32x1xf32> to vector<32x16xf32>
    %6 = arith.addf %3, %5 : vector<32x16xf32>
    %cst_6 = arith.constant 0.000000e+00 : f32
    %7 = vector.broadcast %cst_6 : f32 to vector<32x16xf32>
    %8 = arith.maximumf %6, %7 : vector<32x16xf32>
    %c0_7 = arith.constant 0 : index
    %c0_8 = arith.constant 0 : index
    %c0_9 = arith.constant 0 : index
    %9 = vector.load %arg5[%c0_7, %c0_8, %c0_9] : memref<1x32x16xf32, #tpu.memory_space<vmem>>, vector<1x32x16xf32>
    %10 = vector.shape_cast %9 : vector<1x32x16xf32> to vector<32x16xf32>
    %11 = vector.shape_cast %8 : vector<32x16xf32> to vector<1x32x16xf32>
    tpu.vector_store %arg5[%c0_7, %c0_8, %c0_9], %11 {strides = array<i32>} : memref<1x32x16xf32, #tpu.memory_space<vmem>>, vector<1x32x16xf32>,
    return
  }
  func.func @transform_0(%arg0: i32, %arg1: i32) -> (i32, i32, i32) {
    %c0_i32 = arith.constant 0 : i32
    %c0_i32_0 = arith.constant 0 : i32
    return %arg0, %c0_i32, %arg1 : i32, i32, i32
  }
  func.func @transform_1(%arg0: i32, %arg1: i32) -> (i32, i32) {
    %c0_i32 = arith.constant 0 : i32
    %c0_i32_0 = arith.constant 0 : i32
    %c0_i32_1 = arith.constant 0 : i32
    return %c0_i32, %c0_i32_0 : i32, i32
  }
  func.func @transform_2(%arg0: i32, %arg1: i32) -> (i32, i32) {
    %c0_i32 = arith.constant 0 : i32
    %c0_i32_0 = arith.constant 0 : i32
    %c0_i32_1 = arith.constant 0 : i32
    return %c0_i32, %c0_i32_0 : i32, i32
  }
  func.func @transform_3(%arg0: i32, %arg1: i32) -> (i32, i32, i32) {
    %c0_i32 = arith.constant 0 : i32
    %c0_i32_0 = arith.constant 0 : i32
    return %arg0, %c0_i32, %arg1 : i32, i32, i32
  }
}

</mosaic_0001>

<llo_original>
// kernel: conv_bn_relu_1d.1
$region0: #{conv_bn_relu_1d.1}
  #allocation0 [shape = 'u32[]', space=smem, size = 0x4, offset = 0x4, fixed_abs, tag = 'smem constant byte address 0x4 - core index']
  #allocation1 [shape = 'u32[144,128]{1,0:T(1,128)}', space=vmem, size = 0x12000, scoped, tag = 'internal scratch']
  %s0 = inlined_call_operand.vmem [shape: f32[2,4,16], index: 0, kind: input, shape index: {}]
  %s1 = inlined_call_operand.vmem [shape: f32[32,4], index: 1, kind: input, shape index: {}]
  %s2 = inlined_call_operand.vmem [shape: f32[32,1], index: 2, kind: input, shape index: {}]
  %s3 = inlined_call_operand.vmem [shape: f32[2,32,16], index: 3, kind: output, shape index: {}]
  %s4 = sld [smem:[#allocation0]]
  $region45: #{conv_bn_relu_1d.1} parent=0
    _
  %s6 = ssub.s32 1, %s4
  %s7 = scalar_select 0, %s6, %s4
  loop: start=0, step=1, limit=4
  $region2: #{conv_bn_relu_1d.1} parent=0 // loop_pre_header
    _
  $region3: #{conv_bn_relu_1d.1} parent=0 // loop_header
    %s9 = sphi 0, %s13
    %p10 = scmp.ge.s32.totalorder %s9, 4
    %s16 = sphi 0, %s28
    %s17 = sphi 0, %s24
    %s18 = sphi 0, %s16
    %s19 = sphi 0, %s17
    %s20 = sphi 0, %s18
    %s21 = sphi 0, %s19
    %s33 = sphi 0, %s35
    %s36 = sphi 0, %s33
    %s37 = sphi 0, %s36
    %s53 = sphi 0, %s37
    %s57 = sphi 0, %s57
    %s59 = sphi 0, %s57
    %s60 = sphi 0, %s59
    %s74 = sphi 0, %s60
    %s78 = sphi 0, %s78
    %s80 = sphi 0, %s78
    %s81 = sphi 0, %s80
    %s95 = sphi 0, %s81
    %s103 = sphi 0, %s105
    %s106 = sphi 0, %s103
    %s107 = sphi 0, %s106
    %s123 = sphi 0, %s107
  $region4: #{conv_bn_relu_1d.1} parent=0 // loop_header_branch
    %12 = sbr.rel (%p10) target = $region8
  $region5: #{conv_bn_relu_1d.1} parent=0 // loop_body
    %s14 = ssub.s32 %s9, 1
    %s15 = ssub.s32 %s9, 2
    %s22 = sadd.s32 1, %s17
    %p23 = scmp.ge.s32.totalorder %s22, 1
    %s24 = scalar_select %p23, 0, %s22
    %s25 = sadd.s32 1, %s16
    %s26 = scalar_select %p23, %s25, %s16
    %p27 = scmp.ge.s32.totalorder %s26, 2
    %s28 = scalar_select %p27, 0, %s26
    %s29 = ssub.s32 %s16, %s28
    %s30 = ssub.s32 %s17, %s24
    %s31 = sor.u32 %s29, %s30
    %p32 = scmp.eq.s32.totalorder %s31, 0
    %s34 = sadd.s32 %s33, 1
    %s35 = scalar_select %p32, %s33, %s34
    %p38 = pneg %p32
    %p39 = scmp.eq.s32.totalorder %s9, 1
    %p40 = por %p38, %p39
    %p41 = scmp.ne.s32.totalorder %s33, %s36
    %p42 = scmp.eq.s32.totalorder %s9, 0
    %p43 = por %p41, %p42
    %p44 = scmp.ne.s32.totalorder %s33, %s36
    %p45 = scmp.eq.s32.totalorder %s14, 1
    %p46 = por %p44, %p45
    %p47 = scmp.ne.s32.totalorder %s36, %s37
    %p48 = scmp.eq.s32.totalorder %s14, 0
    %p49 = por %p47, %p48
    %p50 = scmp.ne.s32.totalorder %s36, %s37
    %p51 = scmp.eq.s32.totalorder %s15, 1
    %p52 = por %p50, %p51
    %p54 = scmp.ne.s32.totalorder %s37, %s53
    %p55 = scmp.eq.s32.totalorder %s15, 0
    %p56 = por %p54, %p55
    %s58 = sadd.s32 %s57, 1
    %p61 = scmp.eq.s32.totalorder %s9, 1
    %p62 = scmp.ne.s32.totalorder %s57, %s59
    %p63 = scmp.eq.s32.totalorder %s9, 0
    %p64 = por %p62, %p63
    %p65 = scmp.ne.s32.totalorder %s57, %s59
    %p66 = scmp.eq.s32.totalorder %s14, 1
    %p67 = por %p65, %p66
    %p68 = scmp.ne.s32.totalorder %s59, %s60
    %p69 = scmp.eq.s32.totalorder %s14, 0
    %p70 = por %p68, %p69
    %p71 = scmp.ne.s32.totalorder %s59, %s60
    %p72 = scmp.eq.s32.totalorder %s15, 1
    %p73 = por %p71, %p72
    %p75 = scmp.ne.s32.totalorder %s60, %s74
    %p76 = scmp.eq.s32.totalorder %s15, 0
    %p77 = por %p75, %p76
    %s79 = sadd.s32 %s78, 1
    %p82 = scmp.eq.s32.totalorder %s9, 1
    %p83 = scmp.ne.s32.totalorder %s78, %s80
    %p84 = scmp.eq.s32.totalorder %s9, 0
    %p85 = por %p83, %p84
    %p86 = scmp.ne.s32.totalorder %s78, %s80
    %p87 = scmp.eq.s32.totalorder %s14, 1
    %p88 = por %p86, %p87
    %p89 = scmp.ne.s32.totalorder %s80, %s81
    %p90 = scmp.eq.s32.totalorder %s14, 0
    %p91 = por %p89, %p90
    %p92 = scmp.ne.s32.totalorder %s80, %s81
    %p93 = scmp.eq.s32.totalorder %s15, 1
    %p94 = por %p92, %p93
    %p96 = scmp.ne.s32.totalorder %s81, %s95
    %p97 = scmp.eq.s32.totalorder %s15, 0
    %p98 = por %p96, %p97
    %s99 = ssub.s32 %s16, %s28
    %s100 = ssub.s32 %s17, %s24
    %s101 = sor.u32 %s99, %s100
    %p102 = scmp.eq.s32.totalorder %s101, 0
    %s104 = sadd.s32 %s103, 1
    %s105 = scalar_select %p102, %s103, %s104
    %p108 = pneg %p102
    %p109 = scmp.eq.s32.totalorder %s9, 1
    %p110 = por %p108, %p109
    %p111 = scmp.ne.s32.totalorder %s103, %s106
    %p112 = scmp.eq.s32.totalorder %s9, 0
    %p113 = por %p111, %p112
    %p114 = scmp.ne.s32.totalorder %s103, %s106
    %p115 = scmp.eq.s32.totalorder %s14, 1
    %p116 = por %p114, %p115
    %p117 = scmp.ne.s32.totalorder %s106, %s107
    %p118 = scmp.eq.s32.totalorder %s14, 0
    %p119 = por %p117, %p118
    %p120 = scmp.ne.s32.totalorder %s106, %s107
    %p121 = scmp.eq.s32.totalorder %s15, 1
    %p122 = por %p120, %p121
    %p124 = scmp.ne.s32.totalorder %s107, %s123
    %p125 = scmp.eq.s32.totalorder %s15, 0
    %p126 = por %p124, %p125
    %p127 = scmp.le.s32.totalorder 1, %s9
    %p128 = scmp.lt.s32.totalorder %s9, 3
    %p129 = pnand %p127, %p128
    %p130 = pneg %p129
    // Predicated region
    $region9: #{conv_bn_relu_1d.1} parent=5 // pred_check
      _
    $region10: #{conv_bn_relu_1d.1} parent=5 // pred_check_branch
      %132 = sbr.rel (%p129) target = $region12
    $region11: #{conv_bn_relu_1d.1} parent=5 // pred_region
      %s133 = ssub.s32 %s9, 1
      // Predicated region
      $region13: #{conv_bn_relu_1d.1} parent=11 // pred_check
        %p134 = pneg %p70
      $region14: #{conv_bn_relu_1d.1} parent=11 // pred_check_branch
        %136 = sbr.rel (%p134) target = $region16
      $region15: #{conv_bn_relu_1d.1} parent=11 // pred_region
        _
      $region16: #{conv_bn_relu_1d.1} parent=11 // pred_fallthru
        _
      // Predicated region
      $region17: #{conv_bn_relu_1d.1} parent=11 // pred_check
        %p137 = pneg %p91
      $region18: #{conv_bn_relu_1d.1} parent=11 // pred_check_branch
        %139 = sbr.rel (%p137) target = $region20
      $region19: #{conv_bn_relu_1d.1} parent=11 // pred_region
        _
      $region20: #{conv_bn_relu_1d.1} parent=11 // pred_fallthru
        _
    $region12: #{conv_bn_relu_1d.1} parent=5 // pred_fallthru
      _
    %p140 = scmp.lt.s32.totalorder %s9, 2
    // Predicated region
    $region21: #{conv_bn_relu_1d.1} parent=5 // pred_check
      %p141 = pneg %p140
    $region22: #{conv_bn_relu_1d.1} parent=5 // pred_check_branch
      %143 = sbr.rel (%p141) target = $region24
    $region23: #{conv_bn_relu_1d.1} parent=5 // pred_region
      // Predicated region
      $region25: #{conv_bn_relu_1d.1} parent=23 // pred_check
        %p144 = pneg %p43
      $region26: #{conv_bn_relu_1d.1} parent=23 // pred_check_branch
        %146 = sbr.rel (%p144) target = $region28
      $region27: #{conv_bn_relu_1d.1} parent=23 // pred_region
        %p147 = scmp.lt.s32.totalorder %s16, 1
        %s148 = scalar_select %p147, %s16, 1
        %p149 = scmp.lt.s32.totalorder %s17, 0
        %s150 = scalar_select %p149, %s17, 0
        %s151 = sadd.s32 %s150, %s148
        %s152 = smul.addr %s151, 4
        %s153 = scalar_lea.vmem %s0, %s152
      $region28: #{conv_bn_relu_1d.1} parent=23 // pred_fallthru
        _
    $region24: #{conv_bn_relu_1d.1} parent=5 // pred_fallthru
      _
    %p154 = scmp.le.s32.totalorder 1, %s9
    %p155 = scmp.lt.s32.totalorder %s9, 3
    %p156 = pnand %p154, %p155
    %p157 = pneg %p156
    // Predicated region
    $region29: #{conv_bn_relu_1d.1} parent=5 // pred_check
      _
    $region30: #{conv_bn_relu_1d.1} parent=5 // pred_check_branch
      %159 = sbr.rel (%p156) target = $region32
    $region31: #{conv_bn_relu_1d.1} parent=5 // pred_region
      %s160 = ssub.s32 %s9, 1
      %p161 = scmp.lt.s32.totalorder %s18, 1
      %s162 = scalar_select %p161, %s18, 1
      %p163 = scmp.lt.s32.totalorder %s19, 0
      %s164 = scalar_select %p163, %s19, 0
      %s165 = sadd.s32 %s164, %s162
      %s166 = smul.addr %s165, 4
      %s167 = scalar_lea.vmem %s0, %s166
      %p168 = pneg %p49
      %p169 = pneg %p46
      %p170 = pneg %p70
      %p171 = pneg %p67
      %p172 = pneg %p91
      %p173 = pneg %p88
      %p174 = pneg %p119
      %p175 = pneg %p116
      %p176 = scmp.lt.s32.totalorder %s18, 1
      %s177 = scalar_select %p176, %s18, 1
      %p178 = scmp.lt.s32.totalorder %s19, 0
      %s179 = scalar_select %p178, %s19, 0
      %s180 = smul.addr %s177, 4
      %s181 = sadd.s32 %s179, %s180
      %s182 = smul.addr %s181, 8
      %s183 = scalar_lea.vmem %s3, %s182
      %p184 = scmp.lt.s32.totalorder %s18, 1
      %s185 = scalar_select %p184, %s18, 1
      %p186 = scmp.lt.s32.totalorder %s19, 0
      %s187 = scalar_select %p186, %s19, 0
      %s188 = sadd.s32 %s187, %s185
      %s189 = smul.addr %s188, 4
      %s190 = scalar_lea.vmem %s0, %s189
      %p191 = scmp.lt.s32.totalorder %s18, 1
      %s192 = scalar_select %p191, %s18, 1
      %p193 = scmp.lt.s32.totalorder %s19, 0
      %s194 = scalar_select %p193, %s19, 0
      %s195 = smul.addr %s192, 4
      %s196 = sadd.s32 %s194, %s195
      %s197 = smul.addr %s196, 8
      %s198 = scalar_lea.vmem %s3, %s197
      %v199 = vld [vmem:[%s190] sm:$0xf]
      %v200 = vld [vmem:[%s1] sm:$0xff]
      %v201 = vld [vmem:[%s1 + $0x8] sm:$0xff]
      %v202 = vld [vmem:[%s1 + $0x10] sm:$0xff]
      %v203 = vld [vmem:[%s1 + $0x18] sm:$0xff]
      %v204 = vld [vmem:[%s2] sm:$0xff]
      %v205 = vld [vmem:[%s2 + $0x8] sm:$0xff]
      %v206 = vld [vmem:[%s2 + $0x10] sm:$0xff]
      %v207 = vld [vmem:[%s2 + $0x18] sm:$0xff]
      %209 = vset.pattern.permute.xlu0 0
      %210 = vperm.xlu0 %209, %v204
      %v211 = vpop.permute.xlu0 %210
      %214 = vset.pattern.permute.xlu0 0
      %215 = vperm.xlu0 %214, %v205
      %v216 = vpop.permute.xlu0 %215
      %219 = vset.pattern.permute.xlu0 0
      %220 = vperm.xlu0 %219, %v206
      %v221 = vpop.permute.xlu0 %220
      %224 = vset.pattern.permute.xlu0 0
      %225 = vperm.xlu0 %224, %v207
      %v226 = vpop.permute.xlu0 %225
      %vm228 = vcmask 31744
      %v230 = vsel %vm228, %v200, 0
      %v233 = vsel %vm228, %v201, 0
      %v236 = vsel %vm228, %v202, 0
      %v239 = vsel %vm228, %v203, 0
      %vm241 = vcmask 1043456
      %v243 = vsel %vm241, %v199, 0
      %245 = vmatprep.subr.mxu0 0.0
      %246 = vmatpush1.msra.mxu0 %v243
      %247 = vmatprep.subr.mxu0 0.0
      %248 = vmatpush1.msra.mxu0 0.0
      %249 = vmatprep.subr.mxu0 0.0
      %250 = vmatpush1.msra.mxu0 0.0
      %251 = vmatprep.subr.mxu0 0.0
      %252 = vmatpush1.msra.mxu0 0.0
      %253 = vmatprep.subr.mxu0 0.0
      %254 = vmatpush1.msra.mxu0 0.0
      %255 = vmatprep.subr.mxu0 0.0
      %256 = vmatpush1.msra.mxu0 0.0
      %257 = vmatprep.subr.mxu0 0.0
      %258 = vmatpush1.msra.mxu0 0.0
      %259 = vmatprep.subr.mxu0 0.0
      %260 = vmatpush1.msra.mxu0 0.0
      %261 = vmatprep.subr.mxu0 0.0
      %262 = vmatpush1.msra.mxu0 0.0
      %263 = vmatprep.subr.mxu0 0.0
      %264 = vmatpush1.msra.mxu0 0.0
      %265 = vmatprep.subr.mxu0 0.0
      %266 = vmatpush1.msra.mxu0 0.0
      %267 = vmatprep.subr.mxu0 0.0
      %268 = vmatpush1.msra.mxu0 0.0
      %269 = vmatprep.subr.mxu0 0.0
      %270 = vmatpush1.msra.mxu0 0.0
      %271 = vmatprep.subr.mxu0 0.0
      %272 = vmatpush1.msra.mxu0 0.0
      %273 = vmatprep.subr.mxu0 0.0
      %274 = vmatpush1.msra.mxu0 0.0
      %275 = vmatprep.subr.mxu0 0.0
      %276 = vmatpush1.msra.mxu0 0.0
      %277 = vmatprep.subr.mxu0 0.0
      %278 = vmatpush1.msra.mxu0 0.0
      %279 = vmatprep.subr.mxu0 0.0
      %280 = vmatpush1.msra.mxu0 0.0
      %281 = vmatprep.subr.mxu0 0.0
      %282 = vmatpush1.msra.mxu0 0.0
      %283 = vmatprep.subr.mxu0 0.0
      %284 = vmatpush1.msra.mxu0 0.0
      %285 = vmatprep.subr.mxu0 0.0
      %286 = vmatpush1.msra.mxu0 0.0
      %287 = vmatprep.subr.mxu0 0.0
      %288 = vmatpush1.msra.mxu0 0.0
      %289 = vmatprep.subr.mxu0 0.0
      %290 = vmatpush1.msra.mxu0 0.0
      %291 = vmatprep.subr.mxu0 0.0
      %292 = vmatpush1.msra.mxu0 0.0
      %293 = vmatprep.subr.mxu0 0.0
      %294 = vmatpush1.msra.mxu0 0.0
      %295 = vmatprep.subr.mxu0 0.0
      %296 = vmatpush1.msra.mxu0 0.0
      %297 = vmatprep.subr.mxu0 0.0
      %298 = vmatpush1.msra.mxu0 0.0
      %299 = vmatprep.subr.mxu0 0.0
      %300 = vmatpush1.msra.mxu0 0.0
      %301 = vmatprep.subr.mxu0 0.0
      %302 = vmatpush1.msra.mxu0 0.0
      %303 = vmatprep.subr.mxu0 0.0
      %304 = vmatpush1.msra.mxu0 0.0
      %305 = vmatprep.subr.mxu0 0.0
      %306 = vmatpush1.msra.mxu0 0.0
      %307 = vmatprep.subr.mxu0 0.0
      %308 = vmatpush1.msra.mxu0 0.0
      %309 = vmatprep.mubr.f32.mxu0 0.0
      %310 = vmatmul.mubr.f32.gmra.mrb[0].mxu0 %v230
      %v311 = vpop.f32.mrb[0].mxu0
      %v312 = vadd.f32 %v211, %v311
      %v313 = vpop.f32.mrb[0].mxu0
      %314 = vmatprep.mubr.f32.mxu0 0.0
      %315 = vmatmul.mubr.f32.gmra.mrb[0].mxu0 %v233
      %v316 = vpop.f32.mrb[0].mxu0
      %v317 = vadd.f32 %v216, %v316
      %v318 = vpop.f32.mrb[0].mxu0
      %319 = vmatprep.mubr.f32.mxu0 0.0
      %320 = vmatmul.mubr.f32.gmra.mrb[0].mxu0 %v236
      %v321 = vpop.f32.mrb[0].mxu0
      %v322 = vadd.f32 %v221, %v321
      %v323 = vpop.f32.mrb[0].mxu0
      %324 = vmatprep.mubr.f32.mxu0 0.0
      %325 = vmatmul.mubr.f32.gmra.mrb[0].mxu0 %v239
      %v326 = vpop.f32.mrb[0].mxu0
      %v327 = vadd.f32 %v226, %v326
      %v328 = vpop.f32.mrb[0].mxu0
      %329 = vdwg.mxu0
      %v330 = vmax.f32 %v312, 0.0
      %v331 = vmax.f32 %v317, 0.0
      %v332 = vmax.f32 %v322, 0.0
      %v333 = vmax.f32 %v327, 0.0
      %vm334 = vcmask 130048
      %335 = vst.msk [vmem:[%s198] sm:$0xff] %vm334, %v330
      %336 = vst.msk [vmem:[%s198 + $0x8] sm:$0xff] %vm334, %v331
      %337 = vst.msk [vmem:[%s198 + $0x10] sm:$0xff] %vm334, %v332
      %338 = vst.msk [vmem:[%s198 + $0x18] sm:$0xff] %vm334, %v333
      %p339 = scmp.lt.s32.totalorder %s18, 1
      %s340 = scalar_select %p339, %s18, 1
      %p341 = scmp.lt.s32.totalorder %s19, 0
      %s342 = scalar_select %p341, %s19, 0
      %s343 = smul.addr %s340, 4
      %s344 = sadd.s32 %s342, %s343
      %s345 = smul.addr %s344, 8
      %s346 = scalar_lea.vmem %s3, %s345
      // Predicated region
      $region33: #{conv_bn_relu_1d.1} parent=31 // pred_check
        %p347 = pneg %p116
      $region34: #{conv_bn_relu_1d.1} parent=31 // pred_check_branch
        %349 = sbr.rel (%p347) target = $region36
      $region35: #{conv_bn_relu_1d.1} parent=31 // pred_region
        _
      $region36: #{conv_bn_relu_1d.1} parent=31 // pred_fallthru
        _
    $region32: #{conv_bn_relu_1d.1} parent=5 // pred_fallthru
      _
    %p350 = scmp.le.s32.totalorder 2, %s9
    // Predicated region
    $region37: #{conv_bn_relu_1d.1} parent=5 // pred_check
      %p351 = pneg %p350
    $region38: #{conv_bn_relu_1d.1} parent=5 // pred_check_branch
      %353 = sbr.rel (%p351) target = $region40
    $region39: #{conv_bn_relu_1d.1} parent=5 // pred_region
      %s354 = ssub.s32 %s9, 2
      // Predicated region
      $region41: #{conv_bn_relu_1d.1} parent=39 // pred_check
        %p355 = pneg %p122
      $region42: #{conv_bn_relu_1d.1} parent=39 // pred_check_branch
        %357 = sbr.rel (%p355) target = $region44
      $region43: #{conv_bn_relu_1d.1} parent=39 // pred_region
        %p358 = scmp.lt.s32.totalorder %s20, 1
        %s359 = scalar_select %p358, %s20, 1
        %p360 = scmp.lt.s32.totalorder %s21, 0
        %s361 = scalar_select %p360, %s21, 0
        %s362 = smul.addr %s359, 4
        %s363 = sadd.s32 %s361, %s362
        %s364 = smul.addr %s363, 8
        %s365 = scalar_lea.vmem %s3, %s364
      $region44: #{conv_bn_relu_1d.1} parent=39 // pred_fallthru
        _
    $region40: #{conv_bn_relu_1d.1} parent=5 // pred_fallthru
      _
  $region6: #{conv_bn_relu_1d.1} parent=0 // loop_footer
    %s13 = sadd.s32 1, %s9
  $region7: #{conv_bn_relu_1d.1} parent=0 // loop_footer_branch
    %8 = sbr.rel target = $region3
  $region8: #{conv_bn_relu_1d.1} parent=0 // loop_exit
    _

</llo_original>
